<compile_context>
chip_gen: v5e
topology: v5e:2x2
jax: 0.10.0
libtpu: 0.0.40
codegen_flags: <defaults>
</compile_context>

<pallas_src>
import functools

import jax
import jax.numpy as jnp
from jax import lax
from jax.experimental import pallas as pl
from jax.experimental.pallas import tpu as pltpu

EPS = 1e-6
_TARGET_BLOCK_BYTES = 4 * 1024 * 1024   # ~4 MiB per input block (double-buffered by Pallas)
_VMEM_LIMIT_BYTES = 48 * 1024 * 1024    # > default scoped limit on v5e/v6e, < v7x physical


def _dice_stats_kernel(x_ref, t_ref, out_ref, *, use_sigmoid, need_mask, k_steps, true_len):
    """Accumulates per-channel [sum(p*t), sum(p*p), sum(t*t)].

    x_ref:   (C, TR, L) logits block (native dtype, upcast here)
    t_ref:   (TR, L)    integer class labels block
    out_ref: (C, 3)     float32 accumulator (resident across the K reduction axis)
    """
    k = pl.program_id(2)

    @pl.when(k == 0)
    def _init():
        out_ref[...] = jnp.zeros_like(out_ref)

    x = x_ref[...].astype(jnp.float32)        # (C, TR, L)
    t = t_ref[...].astype(jnp.int32)          # (TR, L)

    if use_sigmoid:
        p = jax.nn.sigmoid(x)                 # nn.Sigmoid()
    else:
        # nn.Softmax(dim=1): channel axis is axis 0 of this block.
        m = jnp.max(x, axis=0, keepdims=True)
        e = jnp.exp(x - m)
        # NOTE: pl.reciprocal(..., approx=True) is a valid speedup on v6e/v7x; kept exact
        # here to match the reference numerics bit-for-bit-ish.
        p = e * pl.reciprocal(jnp.sum(e, axis=0, keepdims=True), approx=False)

    # one_hot(target, C) with channels on axis 0 (== PyTorch permute(0, 4, 1, 2, 3))
    class_ids = lax.broadcasted_iota(jnp.int32, x.shape, 0)         # (C, TR, L)
    oh = (t[None, :, :] == class_ids).astype(jnp.float32)           # (C, TR, L)

    if need_mask:
        # Tail / padding mask: flat spatial index must be < true length.  Computed from the
        # *unclamped* block index so redundant (clamped) grid steps contribute exactly 0.
        tr, lanes = t.shape
        rb = pl.program_id(1) * k_steps + k
        row = lax.broadcasted_iota(jnp.int32, (tr, lanes), 0)
        col = lax.broadcasted_iota(jnp.int32, (tr, lanes), 1)
        flat = (rb * tr + row) * lanes + col
        valid = (flat < true_len)[None, :, :]
        p = jnp.where(valid, p, 0.0)
        oh = jnp.where(valid, oh, 0.0)

    def _rsum(a):                             # (C, TR, L) -> (C, 1)
        s = jnp.sum(a, axis=2, keepdims=True)
        s = jnp.sum(s, axis=1, keepdims=True)
        return s[:, :, 0]

    out_ref[:, 0:1] += _rsum(p * oh)          # intersection
    out_ref[:, 1:2] += _rsum(p * p)           # sum(p*p)
    out_ref[:, 2:3] += _rsum(oh)              # sum(t*t) == sum(t) for one-hot


def dice_loss_forward(logits, target, weight=None, sigmoid_normalization=True):
    """Mirrors _AbstractDiceLoss.forward with the standard per-channel dice.

    logits: (N, C, D, H, W) float (any float dtype; bf16 halves HBM traffic)
    target: (N, D, H, W) integer labels in [0, C) (int8/uint8 labels reduce bandwidth further)
    Returns (loss scalar, per_channel_dice of shape (C,)).
    """
    assert logits.ndim == 5, "'input' must be 5D (N, C, D, H, W)"
    N, C, D, H, W = logits.shape
    assert target.shape == (N, D, H, W), "'input' and 'target' must have the same shape (after one-hot)"

    dhw = D * H * W

    # Free views: NO transpose, NO dtype cast on the big tensors.
    x = logits.reshape(N, C, dhw)
    t = target.reshape(N, 1, dhw)

    # Pad the flat spatial dim to a multiple of 128 only if needed (rare; one extra copy).
    dhw_p = -(-dhw // 128) * 128
    if dhw_p != dhw:
        x = jnp.pad(x, ((0, 0), (0, 0), (0, dhw_p - dhw)))
        t = jnp.pad(t, ((0, 0), (0, 0), (0, dhw_p - dhw)))

    # Split the flat spatial axis into (rows, lanes) so vector tiles are fully dense even
    # for small C (channel stays on a leading "batch" axis of the block).
    lanes = next(c for c in (1024, 512, 256, 128) if dhw_p % c == 0)
    rows = dhw_p // lanes
    x = x.reshape(N, C, rows, lanes)
    t = t.reshape(N, 1, rows, lanes)

    # Pick the row-tile so one input block is ~_TARGET_BLOCK_BYTES (MB-scale tiles amortize
    # the per-grid-step overhead); 32-row granularity is safe for f32/bf16/int8 layouts.
    xbytes = jnp.dtype(x.dtype).itemsize
    tbytes = jnp.dtype(t.dtype).itemsize
    bytes_per_row = lanes * (C * xbytes + tbytes)
    tr = max(32, (_TARGET_BLOCK_BYTES // bytes_per_row) // 32 * 32)
    if tr >= rows:
        tr = rows
    num_blocks = -(-rows // tr)

    # Split the reduction into P parallel super-chunks so v7x's two TensorCores are both
    # busy even at batch size 1 (neutral on single-TC v5e/v6e).
    p_split = 2 if num_blocks >= 2 else 1
    k_steps = -(-num_blocks // p_split)
    need_mask = (p_split * k_steps * tr * lanes) != dhw

    def data_idx(n, p, k):
        rb = jnp.minimum(p * k_steps + k, num_blocks - 1)  # clamp redundant steps (masked to 0)
        return (n, 0, rb, 0)

    kernel = functools.partial(
        _dice_stats_kernel,
        use_sigmoid=sigmoid_normalization,
        need_mask=need_mask,
        k_steps=k_steps,
        true_len=dhw,
    )

    stats = pl.pallas_call(
        kernel,
        out_shape=jax.ShapeDtypeStruct((N, p_split, C, 3), jnp.float32),
        grid_spec=pltpu.PrefetchScalarGridSpec(
            num_scalar_prefetch=0,
            grid=(N, p_split, k_steps),
            in_specs=[
                pl.BlockSpec((None, C, tr, lanes), data_idx),
                pl.BlockSpec((None, None, tr, lanes), data_idx),
            ],
            out_specs=pl.BlockSpec((None, None, C, 3), lambda n, p, k: (n, p, 0, 0)),
        ),
        compiler_params=pltpu.CompilerParams(
            dimension_semantics=("parallel", "parallel", "arbitrary"),
            vmem_limit_bytes=_VMEM_LIMIT_BYTES,
        ),
    )(x, t)

    stats = stats.sum(axis=(0, 1))            # (C, 3) — tiny host-side reduction
    intersect = stats[:, 0]
    if weight is not None:
        intersect = weight * intersect
    denominator = stats[:, 1] + stats[:, 2]
    per_channel_dice = 2.0 * intersect / jnp.clip(denominator, EPS)   # clamp(min=eps)
    loss = 1.0 - jnp.mean(per_channel_dice)
    # TODO(synk): skip_index_after channel-skipping path is a no-op here (None in the base class).
    return loss, per_channel_dice


def _reference(logits, target, sigmoid):
    """Pure-JAX reference of the same forward math."""
    C = logits.shape[1]
    p = jax.nn.sigmoid(logits) if sigmoid else jax.nn.softmax(logits, axis=1)
    oh = jax.nn.one_hot(target, C, dtype=jnp.float32).transpose(0, 4, 1, 2, 3)
    pf = p.transpose(1, 0, 2, 3, 4).reshape(C, -1)
    tf = oh.transpose(1, 0, 2, 3, 4).reshape(C, -1)
    d = 2.0 * (pf * tf).sum(-1) / jnp.clip((pf * pf).sum(-1) + (tf * tf).sum(-1), EPS)
    return 1.0 - d.mean(), d


if __name__ == "__main__":
    key = jax.random.PRNGKey(0)
    k1, k2, k3, k4 = jax.random.split(key, 4)

    # Case 1: sigmoid normalization, tile-friendly volume (no padding / tail mask).
    N, C, D, H, W = 2, 4, 8, 16, 16
    logits = jax.random.normal(k1, (N, C, D, H, W), dtype=jnp.float32)
    target = jax.random.randint(k2, (N, D, H, W), 0, C, dtype=jnp.int32)

    loss, pcd = dice_loss_forward(logits, target, weight=None, sigmoid_normalization=True)
    loss = jax.block_until_ready(loss)
    pcd = jax.block_until_ready(pcd)

    loss_ref, pcd_ref = _reference(logits, target, sigmoid=True)
    assert jnp.allclose(pcd, pcd_ref, atol=1e-5, rtol=1e-5)
    assert jnp.allclose(loss, loss_ref, atol=1e-5, rtol=1e-5)

    # Case 2: softmax normalization + odd spatial size (exercises padding + tail mask).
    N2, C2, D2, H2, W2 = 1, 3, 5, 6, 7
    logits2 = jax.random.normal(k3, (N2, C2, D2, H2, W2), dtype=jnp.float32)
    target2 = jax.random.randint(k4, (N2, D2, H2, W2), 0, C2, dtype=jnp.int32)

    loss2, pcd2 = dice_loss_forward(logits2, target2, sigmoid_normalization=False)
    loss2 = jax.block_until_ready(loss2)
    pcd2 = jax.block_until_ready(pcd2)

    loss2_ref, pcd2_ref = _reference(logits2, target2, sigmoid=False)
    assert jnp.allclose(pcd2, pcd2_ref, atol=1e-5, rtol=1e-5)
    assert jnp.allclose(loss2, loss2_ref, atol=1e-5, rtol=1e-5)

    print("KERNEL_OK")
</pallas_src>

<mosaic_0001>
module attributes {stable_mosaic.version = 11 : i64} {
  func.func @_dice_stats_kernel(%arg0: i32, %arg1: i32, %arg2: i32, %arg3: memref<1x4x2x1024xf32, #tpu.memory_space<vmem>>, %arg4: memref<1x1x2x1024xi32, #tpu.memory_space<vmem>>, %arg5: memref<1x1x4x3xf32, #tpu.memory_space<vmem>>) attributes {dimension_semantics = [#tpu.dimension_semantics<parallel>, #tpu.dimension_semantics<parallel>, #tpu.dimension_semantics<arbitrary>], iteration_bounds = array<i64: 2, 1, 1>, scalar_prefetch = 0 : i64, scratch_operands = 0 : i64, tpu.core_type = #tpu.core_type<tc>, window_params = [{transform_indices = @transform_0, window_bounds = array<i64: 1, 4, 2, 1024>}, {transform_indices = @transform_1, window_bounds = array<i64: 1, 1, 2, 1024>}, {transform_indices = @transform_2, window_bounds = array<i64: 1, 1, 4, 3>}]} {
    %c0_i32 = arith.constant 0 : i32
    %0 = arith.cmpi eq, %arg2, %c0_i32 : i32
    %1 = arith.extui %0 : i1 to i32
    %c0_i32_0 = arith.constant 0 : i32
    %2 = arith.cmpi ne, %1, %c0_i32_0 : i32
    scf.if %2 {
      %cst_36 = arith.constant 0.000000e+00 : f32
      %53 = vector.broadcast %cst_36 : f32 to vector<4x3xf32>
      %c0_37 = arith.constant 0 : index
      %c0_38 = arith.constant 0 : index
      %c0_39 = arith.constant 0 : index
      %c0_40 = arith.constant 0 : index
      %54 = vector.load %arg5[%c0_37, %c0_38, %c0_39, %c0_40] : memref<1x1x4x3xf32, #tpu.memory_space<vmem>>, vector<1x1x4x3xf32>
      %55 = vector.shape_cast %54 : vector<1x1x4x3xf32> to vector<4x3xf32>
      %56 = vector.shape_cast %53 : vector<4x3xf32> to vector<1x1x4x3xf32>
      tpu.vector_store %arg5[%c0_37, %c0_38, %c0_39, %c0_40], %56 {strides = array<i32>} : memref<1x1x4x3xf32, #tpu.memory_space<vmem>>, vector<1x1x4x3xf32>,
    } else {
    }
    %c0 = arith.constant 0 : index
    %c0_1 = arith.constant 0 : index
    %c0_2 = arith.constant 0 : index
    %c0_3 = arith.constant 0 : index
    %3 = vector.load %arg3[%c0, %c0_1, %c0_2, %c0_3] : memref<1x4x2x1024xf32, #tpu.memory_space<vmem>>, vector<1x4x2x1024xf32>
    %4 = vector.shape_cast %3 : vector<1x4x2x1024xf32> to vector<4x2x1024xf32>
    %c0_4 = arith.constant 0 : index
    %c0_5 = arith.constant 0 : index
    %c0_6 = arith.constant 0 : index
    %c0_7 = arith.constant 0 : index
    %5 = vector.load %arg4[%c0_4, %c0_5, %c0_6, %c0_7] : memref<1x1x2x1024xi32, #tpu.memory_space<vmem>>, vector<1x1x2x1024xi32>
    %6 = vector.shape_cast %5 : vector<1x1x2x1024xi32> to vector<2x1024xi32>
    %7 = arith.negf %4 : vector<4x2x1024xf32>
    %8 = math.exp %7 : vector<4x2x1024xf32>
    %cst = arith.constant 1.000000e+00 : f32
    %9 = vector.broadcast %cst : f32 to vector<4x2x1024xf32>
    %10 = arith.addf %9, %8 : vector<4x2x1024xf32>
    %11 = arith.divf %9, %10 : vector<4x2x1024xf32>
    %12 = tpu.iota {dimensions = array<i32: 0>} : vector<4x2x1024xi32>
    %13 = vector.shape_cast %6 : vector<2x1024xi32> to vector<1x2x1024xi32>
    %14 = vector.broadcast %13 : vector<1x2x1024xi32> to vector<4x2x1024xi32>
    %15 = arith.cmpi eq, %14, %12 : vector<4x2x1024xi32>
    %16 = arith.extui %15 : vector<4x2x1024xi1> to vector<4x2x1024xi32>
    %17 = arith.sitofp %16 : vector<4x2x1024xi32> to vector<4x2x1024xf32>
    %c0_8 = arith.constant 0 : index
    %c0_9 = arith.constant 0 : index
    %c0_10 = arith.constant 0 : index
    %c0_11 = arith.constant 0 : index
    %18 = vector.load %arg5[%c0_8, %c0_9, %c0_10, %c0_11] : memref<1x1x4x3xf32, #tpu.memory_space<vmem>>, vector<1x1x4x1xf32>
    %19 = vector.shape_cast %18 : vector<1x1x4x1xf32> to vector<4x1xf32>
    %20 = arith.mulf %11, %17 : vector<4x2x1024xf32>
    %cst_12 = arith.constant dense<0.000000e+00> : vector<4x2xf32>
    %21 = vector.multi_reduction <add>, %20, %cst_12 [2] : vector<4x2x1024xf32> to vector<4x2xf32>
    %22 = vector.shape_cast %21 : vector<4x2xf32> to vector<4x2x1xf32>
    %cst_13 = arith.constant dense<0.000000e+00> : vector<4x1xf32>
    %23 = vector.multi_reduction <add>, %22, %cst_13 [1] : vector<4x2x1xf32> to vector<4x1xf32>
    %24 = vector.shape_cast %23 : vector<4x1xf32> to vector<4x1x1xf32>
    %25 = vector.shape_cast %24 : vector<4x1x1xf32> to vector<4x1xf32>
    %26 = arith.addf %19, %25 : vector<4x1xf32>
    %c0_14 = arith.constant 0 : index
    %c0_15 = arith.constant 0 : index
    %c0_16 = arith.constant 0 : index
    %c0_17 = arith.constant 0 : index
    %27 = vector.load %arg5[%c0_14, %c0_15, %c0_16, %c0_17] : memref<1x1x4x3xf32, #tpu.memory_space<vmem>>, vector<1x1x4x1xf32>
    %28 = vector.shape_cast %27 : vector<1x1x4x1xf32> to vector<4x1xf32>
    %29 = vector.shape_cast %26 : vector<4x1xf32> to vector<1x1x4x1xf32>
    tpu.vector_store %arg5[%c0_14, %c0_15, %c0_16, %c0_17], %29 {strides = array<i32>} : memref<1x1x4x3xf32, #tpu.memory_space<vmem>>, vector<1x1x4x1xf32>,
    %c0_18 = arith.constant 0 : index
    %c0_19 = arith.constant 0 : index
    %c0_20 = arith.constant 0 : index
    %c1 = arith.constant 1 : index
    %30 = vector.load %arg5[%c0_18, %c0_19, %c0_20, %c1] : memref<1x1x4x3xf32, #tpu.memory_space<vmem>>, vector<1x1x4x1xf32>
    %31 = vector.shape_cast %30 : vector<1x1x4x1xf32> to vector<4x1xf32>
    %32 = arith.mulf %11, %11 : vector<4x2x1024xf32>
    %cst_21 = arith.constant dense<0.000000e+00> : vector<4x2xf32>
    %33 = vector.multi_reduction <add>, %32, %cst_21 [2] : vector<4x2x1024xf32> to vector<4x2xf32>
    %34 = vector.shape_cast %33 : vector<4x2xf32> to vector<4x2x1xf32>
    %cst_22 = arith.constant dense<0.000000e+00> : vector<4x1xf32>
    %35 = vector.multi_reduction <add>, %34, %cst_22 [1] : vector<4x2x1xf32> to vector<4x1xf32>
    %36 = vector.shape_cast %35 : vector<4x1xf32> to vector<4x1x1xf32>
    %37 = vector.shape_cast %36 : vector<4x1x1xf32> to vector<4x1xf32>
    %38 = arith.addf %31, %37 : vector<4x1xf32>
    %c0_23 = arith.constant 0 : index
    %c0_24 = arith.constant 0 : index
    %c0_25 = arith.constant 0 : index
    %c1_26 = arith.constant 1 : index
    %39 = vector.load %arg5[%c0_23, %c0_24, %c0_25, %c1_26] : memref<1x1x4x3xf32, #tpu.memory_space<vmem>>, vector<1x1x4x1xf32>
    %40 = vector.shape_cast %39 : vector<1x1x4x1xf32> to vector<4x1xf32>
    %41 = vector.shape_cast %38 : vector<4x1xf32> to vector<1x1x4x1xf32>
    tpu.vector_store %arg5[%c0_23, %c0_24, %c0_25, %c1_26], %41 {strides = array<i32>} : memref<1x1x4x3xf32, #tpu.memory_space<vmem>>, vector<1x1x4x1xf32>,
    %c0_27 = arith.constant 0 : index
    %c0_28 = arith.constant 0 : index
    %c0_29 = arith.constant 0 : index
    %c2 = arith.constant 2 : index
    %42 = vector.load %arg5[%c0_27, %c0_28, %c0_29, %c2] : memref<1x1x4x3xf32, #tpu.memory_space<vmem>>, vector<1x1x4x1xf32>
    %43 = vector.shape_cast %42 : vector<1x1x4x1xf32> to vector<4x1xf32>
    %cst_30 = arith.constant dense<0.000000e+00> : vector<4x2xf32>
    %44 = vector.multi_reduction <add>, %17, %cst_30 [2] : vector<4x2x1024xf32> to vector<4x2xf32>
    %45 = vector.shape_cast %44 : vector<4x2xf32> to vector<4x2x1xf32>
    %cst_31 = arith.constant dense<0.000000e+00> : vector<4x1xf32>
    %46 = vector.multi_reduction <add>, %45, %cst_31 [1] : vector<4x2x1xf32> to vector<4x1xf32>
    %47 = vector.shape_cast %46 : vector<4x1xf32> to vector<4x1x1xf32>
    %48 = vector.shape_cast %47 : vector<4x1x1xf32> to vector<4x1xf32>
    %49 = arith.addf %43, %48 : vector<4x1xf32>
    %c0_32 = arith.constant 0 : index
    %c0_33 = arith.constant 0 : index
    %c0_34 = arith.constant 0 : index
    %c2_35 = arith.constant 2 : index
    %50 = vector.load %arg5[%c0_32, %c0_33, %c0_34, %c2_35] : memref<1x1x4x3xf32, #tpu.memory_space<vmem>>, vector<1x1x4x1xf32>
    %51 = vector.shape_cast %50 : vector<1x1x4x1xf32> to vector<4x1xf32>
    %52 = vector.shape_cast %49 : vector<4x1xf32> to vector<1x1x4x1xf32>
    tpu.vector_store %arg5[%c0_32, %c0_33, %c0_34, %c2_35], %52 {strides = array<i32>} : memref<1x1x4x3xf32, #tpu.memory_space<vmem>>, vector<1x1x4x1xf32>,
    return
  }
  func.func @transform_0(%arg0: i32, %arg1: i32, %arg2: i32) -> (i32, i32, i32, i32) {
    %c1_i32 = arith.constant 1 : i32
    %0 = arith.muli %arg1, %c1_i32 : i32
    %1 = arith.addi %0, %arg2 : i32
    %c0_i32 = arith.constant 0 : i32
    %2 = arith.minsi %1, %c0_i32 : i32
    %c0_i32_0 = arith.constant 0 : i32
    %c0_i32_1 = arith.constant 0 : i32
    %c0_i32_2 = arith.constant 0 : i32
    return %arg0, %c0_i32_0, %2, %c0_i32_1 : i32, i32, i32, i32
  }
  func.func @transform_1(%arg0: i32, %arg1: i32, %arg2: i32) -> (i32, i32, i32, i32) {
    %c1_i32 = arith.constant 1 : i32
    %0 = arith.muli %arg1, %c1_i32 : i32
    %1 = arith.addi %0, %arg2 : i32
    %c0_i32 = arith.constant 0 : i32
    %2 = arith.minsi %1, %c0_i32 : i32
    %c0_i32_0 = arith.constant 0 : i32
    %c0_i32_1 = arith.constant 0 : i32
    %c0_i32_2 = arith.constant 0 : i32
    return %arg0, %c0_i32_0, %2, %c0_i32_1 : i32, i32, i32, i32
  }
  func.func @transform_2(%arg0: i32, %arg1: i32, %arg2: i32) -> (i32, i32, i32, i32) {
    %c0_i32 = arith.constant 0 : i32
    %c0_i32_0 = arith.constant 0 : i32
    %c0_i32_1 = arith.constant 0 : i32
    return %arg0, %arg1, %c0_i32, %c0_i32_0 : i32, i32, i32, i32
  }
}

</mosaic_0001>

<llo_original>
// kernel: tpu_custom_call.1
$region0: #{tpu_custom_call.1}
  #allocation0 [shape = 'u32[]', space=smem, size = 0x4, offset = 0x4, fixed_abs, tag = 'smem constant byte address 0x4 - core index']
  #allocation1 [shape = 'u32[72,128]{1,0:T(1,128)}', space=vmem, size = 0x9000, scoped, tag = 'internal scratch']
  %s0 = inlined_call_operand.hbm [shape: f32[2,4,2,1024], index: 0, kind: input, shape index: {}]
  %s1 = inlined_call_operand.hbm [shape: s32[2,1,2,1024], index: 1, kind: input, shape index: {}]
  %s2 = inlined_call_operand.vmem [shape: f32[2,1,4,3], index: 2, kind: output, shape index: {}]
  %s3 = sld [smem:[#allocation0]]
  $region53: #{tpu_custom_call.1} parent=0
    _
  %s5 = ssub.s32 1, %s3
  %s6 = scalar_select 0, %s5, %s3
  $region1: #{tpu_custom_call.1} parent=0
    #allocation2 [shape = 'u8[65536]{0}', space=vmem, size = 0x10000, scoped, tag = 'input window, operand 0']
    #allocation3 [shape = 's32[2]{0}', space=sflag, size = 0x8, scoped, tag = 'scoped memory for tpu_custom_call.1']
    #allocation4 [shape = 'u8[16384]{0}', space=vmem, size = 0x4000, scoped, tag = 'input window, operand 1']
    #allocation5 [shape = 's32[2]{0}', space=sflag, size = 0x8, scoped, tag = 'scoped memory for tpu_custom_call.1']
    %7 = vsyncpa [#allocation3], 0
    %s8 = scalar_lea.sflag [#allocation3], 1
    %9 = vsyncpa %s8, 0
    %10 = vsyncpa [#allocation5], 0
    %s11 = scalar_lea.sflag [#allocation5], 1
    %12 = vsyncpa %s11, 0
    loop: start=0, step=1, limit=4
    $region2: #{tpu_custom_call.1} parent=1 // loop_pre_header
      _
    $region3: #{tpu_custom_call.1} parent=1 // loop_header
      %s14 = sphi 0, %s18
      %p15 = scmp.ge.s32.totalorder %s14, 4
      %s21 = sphi 0, %s40
      %s22 = sphi 0, %s36
      %s23 = sphi 0, %s32
      %s24 = sphi 0, %s21
      %s25 = sphi 0, %s22
      %s26 = sphi 0, %s23
      %s27 = sphi 0, %s24
      %s28 = sphi 0, %s25
      %s29 = sphi 0, %s26
      %s51 = sphi 0, %s53
      %s54 = sphi 0, %s51
      %s55 = sphi 0, %s54
      %s71 = sphi 0, %s55
      %s85 = sphi 0, %s87
      %s88 = sphi 0, %s85
      %s89 = sphi 0, %s88
      %s105 = sphi 0, %s89
      %s113 = sphi 0, %s115
      %s116 = sphi 0, %s113
      %s117 = sphi 0, %s116
      %s133 = sphi 0, %s117
    $region4: #{tpu_custom_call.1} parent=1 // loop_header_branch
      %17 = sbr.rel (%p15) target = $region8
    $region5: #{tpu_custom_call.1} parent=1 // loop_body
      %s19 = ssub.s32 %s14, 1
      %s20 = ssub.s32 %s14, 2
      %s30 = sadd.s32 1, %s23
      %p31 = scmp.ge.s32.totalorder %s30, 1
      %s32 = scalar_select %p31, 0, %s30
      %s33 = sadd.s32 1, %s22
      %s34 = scalar_select %p31, %s33, %s22
      %p35 = scmp.ge.s32.totalorder %s34, 1
      %s36 = scalar_select %p35, 0, %s34
      %s37 = sadd.s32 1, %s21
      %s38 = scalar_select %p35, %s37, %s21
      %p39 = scmp.ge.s32.totalorder %s38, 2
      %s40 = scalar_select %p39, 0, %s38
      %s41 = sadd.s32 %s22, %s23
      %p42 = scmp.lt.s32.totalorder %s41, 0
      %s43 = scalar_select %p42, %s41, 0
      %s44 = sadd.s32 %s36, %s32
      %p45 = scmp.lt.s32.totalorder %s44, 0
      %s46 = scalar_select %p45, %s44, 0
      %s47 = ssub.s32 %s21, %s40
      %s48 = ssub.s32 %s43, %s46
      %s49 = sor.u32 %s47, %s48
      %p50 = scmp.eq.s32.totalorder %s49, 0
      %s52 = sadd.s32 %s51, 1
      %s53 = scalar_select %p50, %s51, %s52
      %p56 = pneg %p50
      %p57 = scmp.eq.s32.totalorder %s14, 1
      %p58 = por %p56, %p57
      %p59 = scmp.ne.s32.totalorder %s51, %s54
      %p60 = scmp.eq.s32.totalorder %s14, 0
      %p61 = por %p59, %p60
      %p62 = scmp.ne.s32.totalorder %s51, %s54
      %p63 = scmp.eq.s32.totalorder %s19, 1
      %p64 = por %p62, %p63
      %p65 = scmp.ne.s32.totalorder %s54, %s55
      %p66 = scmp.eq.s32.totalorder %s19, 0
      %p67 = por %p65, %p66
      %p68 = scmp.ne.s32.totalorder %s54, %s55
      %p69 = scmp.eq.s32.totalorder %s20, 1
      %p70 = por %p68, %p69
      %p72 = scmp.ne.s32.totalorder %s55, %s71
      %p73 = scmp.eq.s32.totalorder %s20, 0
      %p74 = por %p72, %p73
      %s75 = sadd.s32 %s22, %s23
      %p76 = scmp.lt.s32.totalorder %s75, 0
      %s77 = scalar_select %p76, %s75, 0
      %s78 = sadd.s32 %s36, %s32
      %p79 = scmp.lt.s32.totalorder %s78, 0
      %s80 = scalar_select %p79, %s78, 0
      %s81 = ssub.s32 %s21, %s40
      %s82 = ssub.s32 %s77, %s80
      %s83 = sor.u32 %s81, %s82
      %p84 = scmp.eq.s32.totalorder %s83, 0
      %s86 = sadd.s32 %s85, 1
      %s87 = scalar_select %p84, %s85, %s86
      %p90 = pneg %p84
      %p91 = scmp.eq.s32.totalorder %s14, 1
      %p92 = por %p90, %p91
      %p93 = scmp.ne.s32.totalorder %s85, %s88
      %p94 = scmp.eq.s32.totalorder %s14, 0
      %p95 = por %p93, %p94
      %p96 = scmp.ne.s32.totalorder %s85, %s88
      %p97 = scmp.eq.s32.totalorder %s19, 1
      %p98 = por %p96, %p97
      %p99 = scmp.ne.s32.totalorder %s88, %s89
      %p100 = scmp.eq.s32.totalorder %s19, 0
      %p101 = por %p99, %p100
      %p102 = scmp.ne.s32.totalorder %s88, %s89
      %p103 = scmp.eq.s32.totalorder %s20, 1
      %p104 = por %p102, %p103
      %p106 = scmp.ne.s32.totalorder %s89, %s105
      %p107 = scmp.eq.s32.totalorder %s20, 0
      %p108 = por %p106, %p107
      %s109 = ssub.s32 %s21, %s40
      %s110 = ssub.s32 %s22, %s36
      %s111 = sor.u32 %s109, %s110
      %p112 = scmp.eq.s32.totalorder %s111, 0
      %s114 = sadd.s32 %s113, 1
      %s115 = scalar_select %p112, %s113, %s114
      %p118 = pneg %p112
      %p119 = scmp.eq.s32.totalorder %s14, 1
      %p120 = por %p118, %p119
      %p121 = scmp.ne.s32.totalorder %s113, %s116
      %p122 = scmp.eq.s32.totalorder %s14, 0
      %p123 = por %p121, %p122
      %p124 = scmp.ne.s32.totalorder %s113, %s116
      %p125 = scmp.eq.s32.totalorder %s19, 1
      %p126 = por %p124, %p125
      %p127 = scmp.ne.s32.totalorder %s116, %s117
      %p128 = scmp.eq.s32.totalorder %s19, 0
      %p129 = por %p127, %p128
      %p130 = scmp.ne.s32.totalorder %s116, %s117
      %p131 = scmp.eq.s32.totalorder %s20, 1
      %p132 = por %p130, %p131
      %p134 = scmp.ne.s32.totalorder %s117, %s133
      %p135 = scmp.eq.s32.totalorder %s20, 0
      %p136 = por %p134, %p135
      %p137 = scmp.le.s32.totalorder 1, %s14
      %p138 = scmp.lt.s32.totalorder %s14, 3
      %p139 = pnand %p137, %p138
      %p140 = pneg %p139
      // Predicated region
      $region9: #{tpu_custom_call.1} parent=5 // pred_check
        _
      $region10: #{tpu_custom_call.1} parent=5 // pred_check_branch
        %142 = sbr.rel (%p139) target = $region12
      $region11: #{tpu_custom_call.1} parent=5 // pred_region
        %s143 = ssub.s32 %s14, 1
      $region12: #{tpu_custom_call.1} parent=5 // pred_fallthru
        _
      %p144 = scmp.lt.s32.totalorder %s14, 2
      // Predicated region
      $region13: #{tpu_custom_call.1} parent=5 // pred_check
        %p145 = pneg %p144
      $region14: #{tpu_custom_call.1} parent=5 // pred_check_branch
        %147 = sbr.rel (%p145) target = $region16
      $region15: #{tpu_custom_call.1} parent=5 // pred_region
        // Predicated region
        $region17: #{tpu_custom_call.1} parent=15 // pred_check
          %p148 = pneg %p61
        $region18: #{tpu_custom_call.1} parent=15 // pred_check_branch
          %150 = sbr.rel (%p148) target = $region20
        $region19: #{tpu_custom_call.1} parent=15 // pred_region
          %s151 = sand.u32 %s51, 1
          %s152 = scalar_lea.sflag [#allocation3], %s151
          %s153 = sand.u32 %s51, 1
          %s154 = smul.addr %s153, 64
          %s155 = scalar_lea.vmem [#allocation2], %s154
          %s156 = sadd.s32 %s22, %s23
          %p157 = scmp.lt.s32.totalorder %s156, 0
          %s158 = scalar_select %p157, %s156, 0
          %160 = vsyncadd %s152, 0
          %s161 = smul.addr %s158, 8
          %s162 = smul.addr %s21, 32
          %s163 = sadd.s32 %s161, %s162
          %s164 = smul.addr %s163, 2
          %s165 = scalar_lea.hbm %s0, %s164
          %s166 = sshll.u32 %s165, 4
          %s167 = int_to_ptr.hbm [resolvable:$true] %s166
          %s168 = sshll.u32 %s155, 4
          %s169 = int_to_ptr.vmem [resolvable:$true] %s168
          %174 = dma.hbm_to_vmem [thread:$0]  %s167, 1024, %s169, %s152, 256, 256, 16
        $region20: #{tpu_custom_call.1} parent=15 // pred_fallthru
          _
        // Predicated region
        $region21: #{tpu_custom_call.1} parent=15 // pred_check
          %p175 = pneg %p95
        $region22: #{tpu_custom_call.1} parent=15 // pred_check_branch
          %177 = sbr.rel (%p175) target = $region24
        $region23: #{tpu_custom_call.1} parent=15 // pred_region
          %s178 = sand.u32 %s85, 1
          %s179 = scalar_lea.sflag [#allocation5], %s178
          %s180 = sand.u32 %s85, 1
          %s181 = smul.addr %s180, 16
          %s182 = scalar_lea.vmem [#allocation4], %s181
          %s183 = sadd.s32 %s22, %s23
          %p184 = scmp.lt.s32.totalorder %s183, 0
          %s185 = scalar_select %p184, %s183, 0
          %187 = vsyncadd %s179, 0
          %s188 = smul.addr %s185, 8
          %s189 = smul.addr %s21, 8
          %s190 = sadd.s32 %s188, %s189
          %s191 = smul.addr %s190, 2
          %s192 = scalar_lea.hbm %s1, %s191
          %s194 = sshll.u32 %s192, 4
          %s195 = int_to_ptr.hbm [resolvable:$true] %s194
          %s196 = sshll.u32 %s182, 4
          %s197 = int_to_ptr.vmem [resolvable:$true] %s196
          %199 = dma.hbm_to_vmem [thread:$0]  %s195, 256, %s197, %s179
        $region24: #{tpu_custom_call.1} parent=15 // pred_fallthru
          _
      $region16: #{tpu_custom_call.1} parent=5 // pred_fallthru
        _
      %p200 = scmp.le.s32.totalorder 1, %s14
      %p201 = scmp.lt.s32.totalorder %s14, 3
      %p202 = pnand %p200, %p201
      %p203 = pneg %p202
      // Predicated region
      $region25: #{tpu_custom_call.1} parent=5 // pred_check
        _
      $region26: #{tpu_custom_call.1} parent=5 // pred_check_branch
        %205 = sbr.rel (%p202) target = $region28
      $region27: #{tpu_custom_call.1} parent=5 // pred_region
        %s206 = ssub.s32 %s14, 1
        %s207 = sand.u32 %s54, 1
        %s208 = scalar_lea.sflag [#allocation3], %s207
        %s209 = sand.u32 %s54, 1
        %s210 = smul.addr %s209, 64
        %s211 = scalar_lea.vmem [#allocation2], %s210
        // Predicated region
        $region29: #{tpu_custom_call.1} parent=27 // pred_check
          %p212 = pneg %p67
        $region30: #{tpu_custom_call.1} parent=27 // pred_check_branch
          %214 = sbr.rel (%p212) target = $region32
        $region31: #{tpu_custom_call.1} parent=27 // pred_region
          %216 = dma.done %s208, 1024
        $region32: #{tpu_custom_call.1} parent=27 // pred_fallthru
          _
        %s217 = sand.u32 %s88, 1
        %s218 = scalar_lea.sflag [#allocation5], %s217
        %s219 = sand.u32 %s88, 1
        %s220 = smul.addr %s219, 16
        %s221 = scalar_lea.vmem [#allocation4], %s220
        // Predicated region
        $region33: #{tpu_custom_call.1} parent=27 // pred_check
          %p222 = pneg %p101
        $region34: #{tpu_custom_call.1} parent=27 // pred_check_branch
          %224 = sbr.rel (%p222) target = $region36
        $region35: #{tpu_custom_call.1} parent=27 // pred_region
          %226 = dma.done %s218, 256
        $region36: #{tpu_custom_call.1} parent=27 // pred_fallthru
          _
        %s227 = sand.u32 %s54, 1
        %s228 = scalar_lea.sflag [#allocation3], %s227
        %s229 = sand.u32 %s54, 1
        %s230 = smul.addr %s229, 64
        %s231 = scalar_lea.vmem [#allocation2], %s230
        %p232 = pneg %p67
        %p233 = pneg %p64
        %s234 = sand.u32 %s88, 1
        %s235 = scalar_lea.sflag [#allocation5], %s234
        %s236 = sand.u32 %s88, 1
        %s237 = smul.addr %s236, 16
        %s238 = scalar_lea.vmem [#allocation4], %s237
        %p239 = pneg %p101
        %p240 = pneg %p98
        %p241 = pneg %p129
        %p242 = pneg %p126
        %p243 = scmp.lt.s32.totalorder %s24, 1
        %s244 = scalar_select %p243, %s24, 1
        %p245 = scmp.lt.s32.totalorder %s25, 0
        %s246 = scalar_select %p245, %s25, 0
        %s247 = sadd.s32 %s246, %s244
        %s248 = smul.addr %s247, 4
        %s249 = scalar_lea.vmem %s2, %s248
        %s250 = sadd.s32 %s25, %s26
        %p251 = scmp.lt.s32.totalorder %s250, 0
        %s252 = scalar_select %p251, %s250, 0
        %s253 = sadd.s32 %s25, %s26
        %p254 = scmp.lt.s32.totalorder %s253, 0
        %s255 = scalar_select %p254, %s253, 0
        %p256 = scmp.lt.s32.totalorder %s24, 1
        %s257 = scalar_select %p256, %s24, 1
        %p258 = scmp.lt.s32.totalorder %s25, 0
        %s259 = scalar_select %p258, %s25, 0
        %s260 = sadd.s32 %s259, %s257
        %s261 = smul.addr %s260, 4
        %s262 = scalar_lea.vmem %s2, %s261
        %p263 = scmp.eq.s32.totalorder %s26, 0
        // Predicated region
        $region37: #{tpu_custom_call.1} parent=27 // pred_check
          %p264 = pneg %p263
        $region38: #{tpu_custom_call.1} parent=27 // pred_check_branch
          %266 = sbr.rel (%p264) target = $region40
        $region39: #{tpu_custom_call.1} parent=27 // pred_region
          %vm267 = vcmask 19456
          %268 = vst.msk [vmem:[%s262] sm:$0xf] %vm267, 0.0
        $region40: #{tpu_custom_call.1} parent=27 // pred_fallthru
          _
        %v269 = vld [vmem:[%s211] sm:$0xff]
        %v270 = vld [vmem:[%s211 + $0x8] sm:$0xff]
        %v271 = vld [vmem:[%s211 + $0x10] sm:$0xff]
        %v272 = vld [vmem:[%s211 + $0x18] sm:$0xff]
        %v273 = vld [vmem:[%s211 + $0x20] sm:$0xff]
        %v274 = vld [vmem:[%s211 + $0x28] sm:$0xff]
        %v275 = vld [vmem:[%s211 + $0x30] sm:$0xff]
        %v276 = vld [vmem:[%s211 + $0x38] sm:$0xff]
        %v277 = vld [vmem:[%s221] sm:$0xff]
        %v278 = vld [vmem:[%s221 + $0x8] sm:$0xff]
        %v279 = vxor.u32 %v269, 2147483648
        %v280 = vxor.u32 %v270, 2147483648
        %v281 = vxor.u32 %v271, 2147483648
        %v282 = vxor.u32 %v272, 2147483648
        %v283 = vxor.u32 %v273, 2147483648
        %v284 = vxor.u32 %v274, 2147483648
        %v285 = vxor.u32 %v275, 2147483648
        %v286 = vxor.u32 %v276, 2147483648
        %v287 = vmul.f32 %v279, 1.442695
        %v288 = vpow.pop %v287
        %v289 = vmul.f32 %v280, 1.442695
        %v290 = vpow.pop %v289
        %v291 = vmul.f32 %v281, 1.442695
        %v292 = vpow.pop %v291
        %v293 = vmul.f32 %v282, 1.442695
        %v294 = vpow.pop %v293
        %v295 = vmul.f32 %v283, 1.442695
        %v296 = vpow.pop %v295
        %v297 = vmul.f32 %v284, 1.442695
        %v298 = vpow.pop %v297
        %v299 = vmul.f32 %v285, 1.442695
        %v300 = vpow.pop %v299
        %v301 = vmul.f32 %v286, 1.442695
        %v302 = vpow.pop %v301
        %v303 = vadd.f32 %v288, 1.0
        %v304 = vadd.f32 %v290, 1.0
        %v305 = vadd.f32 %v292, 1.0
        %v306 = vadd.f32 %v294, 1.0
        %v307 = vadd.f32 %v296, 1.0
        %v308 = vadd.f32 %v298, 1.0
        %v309 = vadd.f32 %v300, 1.0
        %v310 = vadd.f32 %v302, 1.0
        %v311 = vrcp.pop %v303
        %v312 = vmul.f32 %v303, %v311
        %v313 = vsub.f32 1.0, %v312
        %v314 = vmul.f32 %v311, %v313
        %v315 = vadd.f32 %v311, %v314
        %vm316 = vweird.f32 %v303
        %vm317 = vweird.f32 %v311
        %vm318 = vmor %vm316, %vm317
        %v319 = vsel %vm318, %v311, %v315
        %v320 = vand.u32 2147483647, %v303
        %vm321 = vcmp.eq.f32.partialorder %v320, 8.507059e+37
        %v322 = vand.u32 %v303, 2147483648
        %v323 = vor.u32 1.1754944e-38, %v322
        %v324 = vsel %vm321, %v323, %v319
        %v325 = vmul.f32 1.0, %v324
        %v326 = vrcp.pop %v304
        %v327 = vmul.f32 %v304, %v326
        %v328 = vsub.f32 1.0, %v327
        %v329 = vmul.f32 %v326, %v328
        %v330 = vadd.f32 %v326, %v329
        %vm331 = vweird.f32 %v304
        %vm332 = vweird.f32 %v326
        %vm333 = vmor %vm331, %vm332
        %v334 = vsel %vm333, %v326, %v330
        %v335 = vand.u32 2147483647, %v304
        %vm336 = vcmp.eq.f32.partialorder %v335, 8.507059e+37
        %v337 = vand.u32 %v304, 2147483648
        %v338 = vor.u32 1.1754944e-38, %v337
        %v339 = vsel %vm336, %v338, %v334
        %v340 = vmul.f32 1.0, %v339
        %v341 = vrcp.pop %v305
        %v342 = vmul.f32 %v305, %v341
        %v343 = vsub.f32 1.0, %v342
        %v344 = vmul.f32 %v341, %v343
        %v345 = vadd.f32 %v341, %v344
        %vm346 = vweird.f32 %v305
        %vm347 = vweird.f32 %v341
        %vm348 = vmor %vm346, %vm347
        %v349 = vsel %vm348, %v341, %v345
        %v350 = vand.u32 2147483647, %v305
        %vm351 = vcmp.eq.f32.partialorder %v350, 8.507059e+37
        %v352 = vand.u32 %v305, 2147483648
        %v353 = vor.u32 1.1754944e-38, %v352
        %v354 = vsel %vm351, %v353, %v349
        %v355 = vmul.f32 1.0, %v354
        %v356 = vrcp.pop %v306
        %v357 = vmul.f32 %v306, %v356
        %v358 = vsub.f32 1.0, %v357
        %v359 = vmul.f32 %v356, %v358
        %v360 = vadd.f32 %v356, %v359
        %vm361 = vweird.f32 %v306
        %vm362 = vweird.f32 %v356
        %vm363 = vmor %vm361, %vm362
        %v364 = vsel %vm363, %v356, %v360
        %v365 = vand.u32 2147483647, %v306
        %vm366 = vcmp.eq.f32.partialorder %v365, 8.507059e+37
        %v367 = vand.u32 %v306, 2147483648
        %v368 = vor.u32 1.1754944e-38, %v367
        %v369 = vsel %vm366, %v368, %v364
        %v370 = vmul.f32 1.0, %v369
        %v371 = vrcp.pop %v307
        %v372 = vmul.f32 %v307, %v371
        %v373 = vsub.f32 1.0, %v372
        %v374 = vmul.f32 %v371, %v373
        %v375 = vadd.f32 %v371, %v374
        %vm376 = vweird.f32 %v307
        %vm377 = vweird.f32 %v371
        %vm378 = vmor %vm376, %vm377
        %v379 = vsel %vm378, %v371, %v375
        %v380 = vand.u32 2147483647, %v307
        %vm381 = vcmp.eq.f32.partialorder %v380, 8.507059e+37
        %v382 = vand.u32 %v307, 2147483648
        %v383 = vor.u32 1.1754944e-38, %v382
        %v384 = vsel %vm381, %v383, %v379
        %v385 = vmul.f32 1.0, %v384
        %v386 = vrcp.pop %v308
        %v387 = vmul.f32 %v308, %v386
        %v388 = vsub.f32 1.0, %v387
        %v389 = vmul.f32 %v386, %v388
        %v390 = vadd.f32 %v386, %v389
        %vm391 = vweird.f32 %v308
        %vm392 = vweird.f32 %v386
        %vm393 = vmor %vm391, %vm392
        %v394 = vsel %vm393, %v386, %v390
        %v395 = vand.u32 2147483647, %v308
        %vm396 = vcmp.eq.f32.partialorder %v395, 8.507059e+37
        %v397 = vand.u32 %v308, 2147483648
        %v398 = vor.u32 1.1754944e-38, %v397
        %v399 = vsel %vm396, %v398, %v394
        %v400 = vmul.f32 1.0, %v399
        %v401 = vrcp.pop %v309
        %v402 = vmul.f32 %v309, %v401
        %v403 = vsub.f32 1.0, %v402
        %v404 = vmul.f32 %v401, %v403
        %v405 = vadd.f32 %v401, %v404
        %vm406 = vweird.f32 %v309
        %vm407 = vweird.f32 %v401
        %vm408 = vmor %vm406, %vm407
        %v409 = vsel %vm408, %v401, %v405
        %v410 = vand.u32 2147483647, %v309
        %vm411 = vcmp.eq.f32.partialorder %v410, 8.507059e+37
        %v412 = vand.u32 %v309, 2147483648
        %v413 = vor.u32 1.1754944e-38, %v412
        %v414 = vsel %vm411, %v413, %v409
        %v415 = vmul.f32 1.0, %v414
        %v416 = vrcp.pop %v310
        %v417 = vmul.f32 %v310, %v416
        %v418 = vsub.f32 1.0, %v417
        %v419 = vmul.f32 %v416, %v418
        %v420 = vadd.f32 %v416, %v419
        %vm421 = vweird.f32 %v310
        %vm422 = vweird.f32 %v416
        %vm423 = vmor %vm421, %vm422
        %v424 = vsel %vm423, %v416, %v420
        %v425 = vand.u32 2147483647, %v310
        %vm426 = vcmp.eq.f32.partialorder %v425, 8.507059e+37
        %v427 = vand.u32 %v310, 2147483648
        %v428 = vor.u32 1.1754944e-38, %v427
        %v429 = vsel %vm426, %v428, %v424
        %v430 = vmul.f32 1.0, %v429
        %vm431 = vcmp.eq.s32.totalorder %v277, 0
        %vm432 = vcmp.eq.s32.totalorder %v278, 0
        %vm433 = vcmp.eq.s32.totalorder %v277, 1
        %vm434 = vcmp.eq.s32.totalorder %v278, 1
        %vm435 = vcmp.eq.s32.totalorder %v277, 2
        %vm436 = vcmp.eq.s32.totalorder %v278, 2
        %vm437 = vcmp.eq.s32.totalorder %v277, 3
        %vm438 = vcmp.eq.s32.totalorder %v278, 3
        %v439 = vsel %vm431, 1, 0
        %v440 = vsel %vm432, 1, 0
        %v441 = vsel %vm433, 1, 0
        %v442 = vsel %vm434, 1, 0
        %v443 = vsel %vm435, 1, 0
        %v444 = vsel %vm436, 1, 0
        %v445 = vsel %vm437, 1, 0
        %v446 = vsel %vm438, 1, 0
        %v447 = vcvt.s32.f32 %v439
        %v448 = vcvt.s32.f32 %v440
        %v449 = vcvt.s32.f32 %v441
        %v450 = vcvt.s32.f32 %v442
        %v451 = vcvt.s32.f32 %v443
        %v452 = vcvt.s32.f32 %v444
        %v453 = vcvt.s32.f32 %v445
        %v454 = vcvt.s32.f32 %v446
        %v455 = vld [vmem:[%s262] sm:$0xf]
        %v456 = vmul.f32 %v325, %v447
        %v457 = vmul.f32 %v340, %v448
        %v458 = vmul.f32 %v355, %v449
        %v459 = vmul.f32 %v370, %v450
        %v460 = vmul.f32 %v385, %v451
        %v461 = vmul.f32 %v400, %v452
        %v462 = vmul.f32 %v415, %v453
        %v463 = vmul.f32 %v430, %v454
        %472 = vst [vmem:[#allocation1] ss:$4 sm:$0xff] %v456
        %s473 = scalar_lea.vmem [#allocation1], 32
        %474 = vst [vmem:[%s473] ss:$4 sm:$0xff] %v457
        %v475 = vld.sshfl [vmem:[#allocation1] sm:$0xff pattern:$0x73625140]
        %v476 = vld.sshfl [vmem:[#allocation1 + $0x8] sm:$0xff pattern:$0x73625140]
        %v477 = vld.sshfl [vmem:[#allocation1 + $0x10] sm:$0xff pattern:$0x73625140]
        %v478 = vld.sshfl [vmem:[#allocation1 + $0x18] sm:$0xff pattern:$0x73625140]
        %v479 = vld.sshfl [vmem:[#allocation1 + $0x20] sm:$0xff pattern:$0x73625140]
        %v480 = vld.sshfl [vmem:[#allocation1 + $0x28] sm:$0xff pattern:$0x73625140]
        %v481 = vld.sshfl [vmem:[#allocation1 + $0x30] sm:$0xff pattern:$0x73625140]
        %v482 = vld.sshfl [vmem:[#allocation1 + $0x38] sm:$0xff pattern:$0x73625140]
        %483 = vst [vmem:[#allocation1] ss:$4 sm:$0xff] %v458
        %484 = vst [vmem:[%s473] ss:$4 sm:$0xff] %v459
        %v485 = vld.sshfl [vmem:[#allocation1] sm:$0xff pattern:$0x73625140]
        %v486 = vld.sshfl [vmem:[#allocation1 + $0x8] sm:$0xff pattern:$0x73625140]
        %v487 = vld.sshfl [vmem:[#allocation1 + $0x10] sm:$0xff pattern:$0x73625140]
        %v488 = vld.sshfl [vmem:[#allocation1 + $0x18] sm:$0xff pattern:$0x73625140]
        %v489 = vld.sshfl [vmem:[#allocation1 + $0x20] sm:$0xff pattern:$0x73625140]
        %v490 = vld.sshfl [vmem:[#allocation1 + $0x28] sm:$0xff pattern:$0x73625140]
        %v491 = vld.sshfl [vmem:[#allocation1 + $0x30] sm:$0xff pattern:$0x73625140]
        %v492 = vld.sshfl [vmem:[#allocation1 + $0x38] sm:$0xff pattern:$0x73625140]
        %493 = vst [vmem:[#allocation1] ss:$4 sm:$0xff] %v460
        %494 = vst [vmem:[%s473] ss:$4 sm:$0xff] %v461
        %v495 = vld.sshfl [vmem:[#allocation1] sm:$0xff pattern:$0x73625140]
        %v496 = vld.sshfl [vmem:[#allocation1 + $0x8] sm:$0xff pattern:$0x73625140]
        %v497 = vld.sshfl [vmem:[#allocation1 + $0x10] sm:$0xff pattern:$0x73625140]
        %v498 = vld.sshfl [vmem:[#allocation1 + $0x18] sm:$0xff pattern:$0x73625140]
        %v499 = vld.sshfl [vmem:[#allocation1 + $0x20] sm:$0xff pattern:$0x73625140]
        %v500 = vld.sshfl [vmem:[#allocation1 + $0x28] sm:$0xff pattern:$0x73625140]
        %v501 = vld.sshfl [vmem:[#allocation1 + $0x30] sm:$0xff pattern:$0x73625140]
        %v502 = vld.sshfl [vmem:[#allocation1 + $0x38] sm:$0xff pattern:$0x73625140]
        %503 = vst [vmem:[#allocation1] ss:$4 sm:$0xff] %v462
        %504 = vst [vmem:[%s473] ss:$4 sm:$0xff] %v463
        %v505 = vld.sshfl [vmem:[#allocation1] sm:$0xff pattern:$0x73625140]
        %v506 = vld.sshfl [vmem:[#allocation1 + $0x8] sm:$0xff pattern:$0x73625140]
        %v507 = vld.sshfl [vmem:[#allocation1 + $0x10] sm:$0xff pattern:$0x73625140]
        %v508 = vld.sshfl [vmem:[#allocation1 + $0x18] sm:$0xff pattern:$0x73625140]
        %v509 = vld.sshfl [vmem:[#allocation1 + $0x20] sm:$0xff pattern:$0x73625140]
        %v510 = vld.sshfl [vmem:[#allocation1 + $0x28] sm:$0xff pattern:$0x73625140]
        %v511 = vld.sshfl [vmem:[#allocation1 + $0x30] sm:$0xff pattern:$0x73625140]
        %v512 = vld.sshfl [vmem:[#allocation1 + $0x38] sm:$0xff pattern:$0x73625140]
        %vm545 = vcmask 1041408
        %v546 = vsel %vm545, %v475, 0.0
        %v547 = vsel %vm545, %v476, 0.0
        %v548 = vadd.f32 %v546, %v547
        %v549 = vsel %vm545, %v477, 0.0
        %v550 = vadd.f32 %v548, %v549
        %v551 = vsel %vm545, %v478, 0.0
        %v552 = vadd.f32 %v550, %v551
        %v553 = vsel %vm545, %v479, 0.0
        %v554 = vadd.f32 %v552, %v553
        %v555 = vsel %vm545, %v480, 0.0
        %v556 = vadd.f32 %v554, %v555
        %v557 = vsel %vm545, %v481, 0.0
        %v558 = vadd.f32 %v556, %v557
        %v559 = vsel %vm545, %v482, 0.0
        %v560 = vadd.f32 %v558, %v559
        %561 = vadd.xlane.f32.xlu0 %v560
        %v562 = vpop.xlane.xlu0 %561
        %v563 = vsel %vm545, %v485, 0.0
        %v564 = vsel %vm545, %v486, 0.0
        %v565 = vadd.f32 %v563, %v564
        %v566 = vsel %vm545, %v487, 0.0
        %v567 = vadd.f32 %v565, %v566
        %v568 = vsel %vm545, %v488, 0.0
        %v569 = vadd.f32 %v567, %v568
        %v570 = vsel %vm545, %v489, 0.0
        %v571 = vadd.f32 %v569, %v570
        %v572 = vsel %vm545, %v490, 0.0
        %v573 = vadd.f32 %v571, %v572
        %v574 = vsel %vm545, %v491, 0.0
        %v575 = vadd.f32 %v573, %v574
        %v576 = vsel %vm545, %v492, 0.0
        %v577 = vadd.f32 %v575, %v576
        %578 = vadd.xlane.f32.xlu0 %v577
        %v579 = vpop.xlane.xlu0 %578
        %v580 = vsel %vm545, %v495, 0.0
        %v581 = vsel %vm545, %v496, 0.0
        %v582 = vadd.f32 %v580, %v581
        %v583 = vsel %vm545, %v497, 0.0
        %v584 = vadd.f32 %v582, %v583
        %v585 = vsel %vm545, %v498, 0.0
        %v586 = vadd.f32 %v584, %v585
        %v587 = vsel %vm545, %v499, 0.0
        %v588 = vadd.f32 %v586, %v587
        %v589 = vsel %vm545, %v500, 0.0
        %v590 = vadd.f32 %v588, %v589
        %v591 = vsel %vm545, %v501, 0.0
        %v592 = vadd.f32 %v590, %v591
        %v593 = vsel %vm545, %v502, 0.0
        %v594 = vadd.f32 %v592, %v593
        %595 = vadd.xlane.f32.xlu0 %v594
        %v596 = vpop.xlane.xlu0 %595
        %v597 = vsel %vm545, %v505, 0.0
        %v598 = vsel %vm545, %v506, 0.0
        %v599 = vadd.f32 %v597, %v598
        %v600 = vsel %vm545, %v507, 0.0
        %v601 = vadd.f32 %v599, %v600
        %v602 = vsel %vm545, %v508, 0.0
        %v603 = vadd.f32 %v601, %v602
        %v604 = vsel %vm545, %v509, 0.0
        %v605 = vadd.f32 %v603, %v604
        %v606 = vsel %vm545, %v510, 0.0
        %v607 = vadd.f32 %v605, %v606
        %v608 = vsel %vm545, %v511, 0.0
        %v609 = vadd.f32 %v607, %v608
        %v610 = vsel %vm545, %v512, 0.0
        %v611 = vadd.f32 %v609, %v610
        %612 = vadd.xlane.f32.xlu0 %v611
        %v613 = vpop.xlane.xlu0 %612
        %v614 = vsel %vm545, %v562, 0.0
        %v615 = vrot.slane %v614, 4
        %v616 = vadd.f32 %v614, %v615
        %v617 = vrot.slane %v616, 2
        %v618 = vadd.f32 %v616, %v617
        %v619 = vrot.slane %v618, 1
        %v620 = vadd.f32 %v618, %v619
        %v621 = vsel %vm545, %v579, 0.0
        %v622 = vrot.slane %v621, 4
        %v623 = vadd.f32 %v621, %v622
        %v624 = vrot.slane %v623, 2
        %v625 = vadd.f32 %v623, %v624
        %v626 = vrot.slane %v625, 1
        %v627 = vadd.f32 %v625, %v626
        %v628 = vsel %vm545, %v596, 0.0
        %v629 = vrot.slane %v628, 4
        %v630 = vadd.f32 %v628, %v629
        %v631 = vrot.slane %v630, 2
        %v632 = vadd.f32 %v630, %v631
        %v633 = vrot.slane %v632, 1
        %v634 = vadd.f32 %v632, %v633
        %v635 = vsel %vm545, %v613, 0.0
        %v636 = vrot.slane %v635, 4
        %v637 = vadd.f32 %v635, %v636
        %v638 = vrot.slane %v637, 2
        %v639 = vadd.f32 %v637, %v638
        %v640 = vrot.slane %v639, 1
        %v641 = vadd.f32 %v639, %v640
        %vm646 = vcmask 1041409
        %v647 = vsel %vm646, %v627, %v620
        %vm648 = vcmask 1042434
        %v649 = vsel %vm648, %v634, %v647
        %vm650 = vcmask 1043459
        %v651 = vsel %vm650, %v641, %v649
        %v653 = vadd.f32 %v455, %v651
        %vm654 = vcmask 3072
        %655 = vst.msk [vmem:[%s262] sm:$0xf] %vm654, %v653
        %v656 = vld [vmem:[%s262] sm:$0xf]
        %v657 = vmul.f32 %v325, %v325
        %v658 = vmul.f32 %v340, %v340
        %v659 = vmul.f32 %v355, %v355
        %v660 = vmul.f32 %v370, %v370
        %v661 = vmul.f32 %v385, %v385
        %v662 = vmul.f32 %v400, %v400
        %v663 = vmul.f32 %v415, %v415
        %v664 = vmul.f32 %v430, %v430
        %673 = vst [vmem:[#allocation1] ss:$4 sm:$0xff] %v657
        %s674 = scalar_lea.vmem [#allocation1], 32
        %675 = vst [vmem:[%s674] ss:$4 sm:$0xff] %v658
        %v676 = vld.sshfl [vmem:[#allocation1] sm:$0xff pattern:$0x73625140]
        %v677 = vld.sshfl [vmem:[#allocation1 + $0x8] sm:$0xff pattern:$0x73625140]
        %v678 = vld.sshfl [vmem:[#allocation1 + $0x10] sm:$0xff pattern:$0x73625140]
        %v679 = vld.sshfl [vmem:[#allocation1 + $0x18] sm:$0xff pattern:$0x73625140]
        %v680 = vld.sshfl [vmem:[#allocation1 + $0x20] sm:$0xff pattern:$0x73625140]
        %v681 = vld.sshfl [vmem:[#allocation1 + $0x28] sm:$0xff pattern:$0x73625140]
        %v682 = vld.sshfl [vmem:[#allocation1 + $0x30] sm:$0xff pattern:$0x73625140]
        %v683 = vld.sshfl [vmem:[#allocation1 + $0x38] sm:$0xff pattern:$0x73625140]
        %684 = vst [vmem:[#allocation1] ss:$4 sm:$0xff] %v659
        %685 = vst [vmem:[%s674] ss:$4 sm:$0xff] %v660
        %v686 = vld.sshfl [vmem:[#allocation1] sm:$0xff pattern:$0x73625140]
        %v687 = vld.sshfl [vmem:[#allocation1 + $0x8] sm:$0xff pattern:$0x73625140]
        %v688 = vld.sshfl [vmem:[#allocation1 + $0x10] sm:$0xff pattern:$0x73625140]
        %v689 = vld.sshfl [vmem:[#allocation1 + $0x18] sm:$0xff pattern:$0x73625140]
        %v690 = vld.sshfl [vmem:[#allocation1 + $0x20] sm:$0xff pattern:$0x73625140]
        %v691 = vld.sshfl [vmem:[#allocation1 + $0x28] sm:$0xff pattern:$0x73625140]
        %v692 = vld.sshfl [vmem:[#allocation1 + $0x30] sm:$0xff pattern:$0x73625140]
        %v693 = vld.sshfl [vmem:[#allocation1 + $0x38] sm:$0xff pattern:$0x73625140]
        %694 = vst [vmem:[#allocation1] ss:$4 sm:$0xff] %v661
        %695 = vst [vmem:[%s674] ss:$4 sm:$0xff] %v662
        %v696 = vld.sshfl [vmem:[#allocation1] sm:$0xff pattern:$0x73625140]
        %v697 = vld.sshfl [vmem:[#allocation1 + $0x8] sm:$0xff pattern:$0x73625140]
        %v698 = vld.sshfl [vmem:[#allocation1 + $0x10] sm:$0xff pattern:$0x73625140]
        %v699 = vld.sshfl [vmem:[#allocation1 + $0x18] sm:$0xff pattern:$0x73625140]
        %v700 = vld.sshfl [vmem:[#allocation1 + $0x20] sm:$0xff pattern:$0x73625140]
        %v701 = vld.sshfl [vmem:[#allocation1 + $0x28] sm:$0xff pattern:$0x73625140]
        %v702 = vld.sshfl [vmem:[#allocation1 + $0x30] sm:$0xff pattern:$0x73625140]
        %v703 = vld.sshfl [vmem:[#allocation1 + $0x38] sm:$0xff pattern:$0x73625140]
        %704 = vst [vmem:[#allocation1] ss:$4 sm:$0xff] %v663
        %705 = vst [vmem:[%s674] ss:$4 sm:$0xff] %v664
        %v706 = vld.sshfl [vmem:[#allocation1] sm:$0xff pattern:$0x73625140]
        %v707 = vld.sshfl [vmem:[#allocation1 + $0x8] sm:$0xff pattern:$0x73625140]
        %v708 = vld.sshfl [vmem:[#allocation1 + $0x10] sm:$0xff pattern:$0x73625140]
        %v709 = vld.sshfl [vmem:[#allocation1 + $0x18] sm:$0xff pattern:$0x73625140]
        %v710 = vld.sshfl [vmem:[#allocation1 + $0x20] sm:$0xff pattern:$0x73625140]
        %v711 = vld.sshfl [vmem:[#allocation1 + $0x28] sm:$0xff pattern:$0x73625140]
        %v712 = vld.sshfl [vmem:[#allocation1 + $0x30] sm:$0xff pattern:$0x73625140]
        %v713 = vld.sshfl [vmem:[#allocation1 + $0x38] sm:$0xff pattern:$0x73625140]
        %v746 = vsel %vm545, %v676, 0.0
        %v747 = vsel %vm545, %v677, 0.0
        %v748 = vadd.f32 %v746, %v747
        %v749 = vsel %vm545, %v678, 0.0
        %v750 = vadd.f32 %v748, %v749
        %v751 = vsel %vm545, %v679, 0.0
        %v752 = vadd.f32 %v750, %v751
        %v753 = vsel %vm545, %v680, 0.0
        %v754 = vadd.f32 %v752, %v753
        %v755 = vsel %vm545, %v681, 0.0
        %v756 = vadd.f32 %v754, %v755
        %v757 = vsel %vm545, %v682, 0.0
        %v758 = vadd.f32 %v756, %v757
        %v759 = vsel %vm545, %v683, 0.0
        %v760 = vadd.f32 %v758, %v759
        %761 = vadd.xlane.f32.xlu0 %v760
        %v762 = vpop.xlane.xlu0 %761
        %v763 = vsel %vm545, %v686, 0.0
        %v764 = vsel %vm545, %v687, 0.0
        %v765 = vadd.f32 %v763, %v764
        %v766 = vsel %vm545, %v688, 0.0
        %v767 = vadd.f32 %v765, %v766
        %v768 = vsel %vm545, %v689, 0.0
        %v769 = vadd.f32 %v767, %v768
        %v770 = vsel %vm545, %v690, 0.0
        %v771 = vadd.f32 %v769, %v770
        %v772 = vsel %vm545, %v691, 0.0
        %v773 = vadd.f32 %v771, %v772
        %v774 = vsel %vm545, %v692, 0.0
        %v775 = vadd.f32 %v773, %v774
        %v776 = vsel %vm545, %v693, 0.0
        %v777 = vadd.f32 %v775, %v776
        %778 = vadd.xlane.f32.xlu0 %v777
        %v779 = vpop.xlane.xlu0 %778
        %v780 = vsel %vm545, %v696, 0.0
        %v781 = vsel %vm545, %v697, 0.0
        %v782 = vadd.f32 %v780, %v781
        %v783 = vsel %vm545, %v698, 0.0
        %v784 = vadd.f32 %v782, %v783
        %v785 = vsel %vm545, %v699, 0.0
        %v786 = vadd.f32 %v784, %v785
        %v787 = vsel %vm545, %v700, 0.0
        %v788 = vadd.f32 %v786, %v787
        %v789 = vsel %vm545, %v701, 0.0
        %v790 = vadd.f32 %v788, %v789
        %v791 = vsel %vm545, %v702, 0.0
        %v792 = vadd.f32 %v790, %v791
        %v793 = vsel %vm545, %v703, 0.0
        %v794 = vadd.f32 %v792, %v793
        %795 = vadd.xlane.f32.xlu0 %v794
        %v796 = vpop.xlane.xlu0 %795
        %v797 = vsel %vm545, %v706, 0.0
        %v798 = vsel %vm545, %v707, 0.0
        %v799 = vadd.f32 %v797, %v798
        %v800 = vsel %vm545, %v708, 0.0
        %v801 = vadd.f32 %v799, %v800
        %v802 = vsel %vm545, %v709, 0.0
        %v803 = vadd.f32 %v801, %v802
        %v804 = vsel %vm545, %v710, 0.0
        %v805 = vadd.f32 %v803, %v804
        %v806 = vsel %vm545, %v711, 0.0
        %v807 = vadd.f32 %v805, %v806
        %v808 = vsel %vm545, %v712, 0.0
        %v809 = vadd.f32 %v807, %v808
        %v810 = vsel %vm545, %v713, 0.0
        %v811 = vadd.f32 %v809, %v810
        %812 = vadd.xlane.f32.xlu0 %v811
        %v813 = vpop.xlane.xlu0 %812
        %v814 = vsel %vm545, %v762, 0.0
        %v815 = vrot.slane %v814, 4
        %v816 = vadd.f32 %v814, %v815
        %v817 = vrot.slane %v816, 2
        %v818 = vadd.f32 %v816, %v817
        %v819 = vrot.slane %v818, 1
        %v820 = vadd.f32 %v818, %v819
        %v821 = vsel %vm545, %v779, 0.0
        %v822 = vrot.slane %v821, 4
        %v823 = vadd.f32 %v821, %v822
        %v824 = vrot.slane %v823, 2
        %v825 = vadd.f32 %v823, %v824
        %v826 = vrot.slane %v825, 1
        %v827 = vadd.f32 %v825, %v826
        %v828 = vsel %vm545, %v796, 0.0
        %v829 = vrot.slane %v828, 4
        %v830 = vadd.f32 %v828, %v829
        %v831 = vrot.slane %v830, 2
        %v832 = vadd.f32 %v830, %v831
        %v833 = vrot.slane %v832, 1
        %v834 = vadd.f32 %v832, %v833
        %v835 = vsel %vm545, %v813, 0.0
        %v836 = vrot.slane %v835, 4
        %v837 = vadd.f32 %v835, %v836
        %v838 = vrot.slane %v837, 2
        %v839 = vadd.f32 %v837, %v838
        %v840 = vrot.slane %v839, 1
        %v841 = vadd.f32 %v839, %v840
        %v846 = vsel %vm646, %v827, %v820
        %v847 = vsel %vm648, %v834, %v846
        %v848 = vsel %vm650, %v841, %v847
        %v850 = vadd.f32 %v656, %v848
        %vm851 = vcmask 11272
        %852 = vst.msk [vmem:[%s262] sm:$0xf] %vm851, %v850
        %v853 = vld [vmem:[%s262] sm:$0xf]
        %862 = vst [vmem:[#allocation1] ss:$4 sm:$0xff] %v447
        %s863 = scalar_lea.vmem [#allocation1], 32
        %864 = vst [vmem:[%s863] ss:$4 sm:$0xff] %v448
        %v865 = vld.sshfl [vmem:[#allocation1] sm:$0xff pattern:$0x73625140]
        %v866 = vld.sshfl [vmem:[#allocation1 + $0x8] sm:$0xff pattern:$0x73625140]
        %v867 = vld.sshfl [vmem:[#allocation1 + $0x10] sm:$0xff pattern:$0x73625140]
        %v868 = vld.sshfl [vmem:[#allocation1 + $0x18] sm:$0xff pattern:$0x73625140]
        %v869 = vld.sshfl [vmem:[#allocation1 + $0x20] sm:$0xff pattern:$0x73625140]
        %v870 = vld.sshfl [vmem:[#allocation1 + $0x28] sm:$0xff pattern:$0x73625140]
        %v871 = vld.sshfl [vmem:[#allocation1 + $0x30] sm:$0xff pattern:$0x73625140]
        %v872 = vld.sshfl [vmem:[#allocation1 + $0x38] sm:$0xff pattern:$0x73625140]
        %873 = vst [vmem:[#allocation1] ss:$4 sm:$0xff] %v449
        %874 = vst [vmem:[%s863] ss:$4 sm:$0xff] %v450
        %v875 = vld.sshfl [vmem:[#allocation1] sm:$0xff pattern:$0x73625140]
        %v876 = vld.sshfl [vmem:[#allocation1 + $0x8] sm:$0xff pattern:$0x73625140]
        %v877 = vld.sshfl [vmem:[#allocation1 + $0x10] sm:$0xff pattern:$0x73625140]
        %v878 = vld.sshfl [vmem:[#allocation1 + $0x18] sm:$0xff pattern:$0x73625140]
        %v879 = vld.sshfl [vmem:[#allocation1 + $0x20] sm:$0xff pattern:$0x73625140]
        %v880 = vld.sshfl [vmem:[#allocation1 + $0x28] sm:$0xff pattern:$0x73625140]
        %v881 = vld.sshfl [vmem:[#allocation1 + $0x30] sm:$0xff pattern:$0x73625140]
        %v882 = vld.sshfl [vmem:[#allocation1 + $0x38] sm:$0xff pattern:$0x73625140]
        %883 = vst [vmem:[#allocation1] ss:$4 sm:$0xff] %v451
        %884 = vst [vmem:[%s863] ss:$4 sm:$0xff] %v452
        %v885 = vld.sshfl [vmem:[#allocation1] sm:$0xff pattern:$0x73625140]
        %v886 = vld.sshfl [vmem:[#allocation1 + $0x8] sm:$0xff pattern:$0x73625140]
        %v887 = vld.sshfl [vmem:[#allocation1 + $0x10] sm:$0xff pattern:$0x73625140]
        %v888 = vld.sshfl [vmem:[#allocation1 + $0x18] sm:$0xff pattern:$0x73625140]
        %v889 = vld.sshfl [vmem:[#allocation1 + $0x20] sm:$0xff pattern:$0x73625140]
        %v890 = vld.sshfl [vmem:[#allocation1 + $0x28] sm:$0xff pattern:$0x73625140]
        %v891 = vld.sshfl [vmem:[#allocation1 + $0x30] sm:$0xff pattern:$0x73625140]
        %v892 = vld.sshfl [vmem:[#allocation1 + $0x38] sm:$0xff pattern:$0x73625140]
        %893 = vst [vmem:[#allocation1] ss:$4 sm:$0xff] %v453
        %894 = vst [vmem:[%s863] ss:$4 sm:$0xff] %v454
        %v895 = vld.sshfl [vmem:[#allocation1] sm:$0xff pattern:$0x73625140]
        %v896 = vld.sshfl [vmem:[#allocation1 + $0x8] sm:$0xff pattern:$0x73625140]
        %v897 = vld.sshfl [vmem:[#allocation1 + $0x10] sm:$0xff pattern:$0x73625140]
        %v898 = vld.sshfl [vmem:[#allocation1 + $0x18] sm:$0xff pattern:$0x73625140]
        %v899 = vld.sshfl [vmem:[#allocation1 + $0x20] sm:$0xff pattern:$0x73625140]
        %v900 = vld.sshfl [vmem:[#allocation1 + $0x28] sm:$0xff pattern:$0x73625140]
        %v901 = vld.sshfl [vmem:[#allocation1 + $0x30] sm:$0xff pattern:$0x73625140]
        %v902 = vld.sshfl [vmem:[#allocation1 + $0x38] sm:$0xff pattern:$0x73625140]
        %v935 = vsel %vm545, %v865, 0.0
        %v936 = vsel %vm545, %v866, 0.0
        %v937 = vadd.f32 %v935, %v936
        %v938 = vsel %vm545, %v867, 0.0
        %v939 = vadd.f32 %v937, %v938
        %v940 = vsel %vm545, %v868, 0.0
        %v941 = vadd.f32 %v939, %v940
        %v942 = vsel %vm545, %v869, 0.0
        %v943 = vadd.f32 %v941, %v942
        %v944 = vsel %vm545, %v870, 0.0
        %v945 = vadd.f32 %v943, %v944
        %v946 = vsel %vm545, %v871, 0.0
        %v947 = vadd.f32 %v945, %v946
        %v948 = vsel %vm545, %v872, 0.0
        %v949 = vadd.f32 %v947, %v948
        %950 = vadd.xlane.f32.xlu0 %v949
        %v951 = vpop.xlane.xlu0 %950
        %v952 = vsel %vm545, %v875, 0.0
        %v953 = vsel %vm545, %v876, 0.0
        %v954 = vadd.f32 %v952, %v953
        %v955 = vsel %vm545, %v877, 0.0
        %v956 = vadd.f32 %v954, %v955
        %v957 = vsel %vm545, %v878, 0.0
        %v958 = vadd.f32 %v956, %v957
        %v959 = vsel %vm545, %v879, 0.0
        %v960 = vadd.f32 %v958, %v959
        %v961 = vsel %vm545, %v880, 0.0
        %v962 = vadd.f32 %v960, %v961
        %v963 = vsel %vm545, %v881, 0.0
        %v964 = vadd.f32 %v962, %v963
        %v965 = vsel %vm545, %v882, 0.0
        %v966 = vadd.f32 %v964, %v965
        %967 = vadd.xlane.f32.xlu0 %v966
        %v968 = vpop.xlane.xlu0 %967
        %v969 = vsel %vm545, %v885, 0.0
        %v970 = vsel %vm545, %v886, 0.0
        %v971 = vadd.f32 %v969, %v970
        %v972 = vsel %vm545, %v887, 0.0
        %v973 = vadd.f32 %v971, %v972
        %v974 = vsel %vm545, %v888, 0.0
        %v975 = vadd.f32 %v973, %v974
        %v976 = vsel %vm545, %v889, 0.0
        %v977 = vadd.f32 %v975, %v976
        %v978 = vsel %vm545, %v890, 0.0
        %v979 = vadd.f32 %v977, %v978
        %v980 = vsel %vm545, %v891, 0.0
        %v981 = vadd.f32 %v979, %v980
        %v982 = vsel %vm545, %v892, 0.0
        %v983 = vadd.f32 %v981, %v982
        %984 = vadd.xlane.f32.xlu0 %v983
        %v985 = vpop.xlane.xlu0 %984
        %v986 = vsel %vm545, %v895, 0.0
        %v987 = vsel %vm545, %v896, 0.0
        %v988 = vadd.f32 %v986, %v987
        %v989 = vsel %vm545, %v897, 0.0
        %v990 = vadd.f32 %v988, %v989
        %v991 = vsel %vm545, %v898, 0.0
        %v992 = vadd.f32 %v990, %v991
        %v993 = vsel %vm545, %v899, 0.0
        %v994 = vadd.f32 %v992, %v993
        %v995 = vsel %vm545, %v900, 0.0
        %v996 = vadd.f32 %v994, %v995
        %v997 = vsel %vm545, %v901, 0.0
        %v998 = vadd.f32 %v996, %v997
        %v999 = vsel %vm545, %v902, 0.0
        %v1000 = vadd.f32 %v998, %v999
        %1001 = vadd.xlane.f32.xlu0 %v1000
        %v1002 = vpop.xlane.xlu0 %1001
        %v1003 = vsel %vm545, %v951, 0.0
        %v1004 = vrot.slane %v1003, 4
        %v1005 = vadd.f32 %v1003, %v1004
        %v1006 = vrot.slane %v1005, 2
        %v1007 = vadd.f32 %v1005, %v1006
        %v1008 = vrot.slane %v1007, 1
        %v1009 = vadd.f32 %v1007, %v1008
        %v1010 = vsel %vm545, %v968, 0.0
        %v1011 = vrot.slane %v1010, 4
        %v1012 = vadd.f32 %v1010, %v1011
        %v1013 = vrot.slane %v1012, 2
        %v1014 = vadd.f32 %v1012, %v1013
        %v1015 = vrot.slane %v1014, 1
        %v1016 = vadd.f32 %v1014, %v1015
        %v1017 = vsel %vm545, %v985, 0.0
        %v1018 = vrot.slane %v1017, 4
        %v1019 = vadd.f32 %v1017, %v1018
        %v1020 = vrot.slane %v1019, 2
        %v1021 = vadd.f32 %v1019, %v1020
        %v1022 = vrot.slane %v1021, 1
        %v1023 = vadd.f32 %v1021, %v1022
        %v1024 = vsel %vm545, %v1002, 0.0
        %v1025 = vrot.slane %v1024, 4
        %v1026 = vadd.f32 %v1024, %v1025
        %v1027 = vrot.slane %v1026, 2
        %v1028 = vadd.f32 %v1026, %v1027
        %v1029 = vrot.slane %v1028, 1
        %v1030 = vadd.f32 %v1028, %v1029
        %v1035 = vsel %vm646, %v1016, %v1009
        %v1036 = vsel %vm648, %v1023, %v1035
        %v1037 = vsel %vm650, %v1030, %v1036
        %v1039 = vadd.f32 %v853, %v1037
        %vm1040 = vcmask 19472
        %1041 = vst.msk [vmem:[%s262] sm:$0xf] %vm1040, %v1039
        %p1042 = scmp.lt.s32.totalorder %s24, 1
        %s1043 = scalar_select %p1042, %s24, 1
        %p1044 = scmp.lt.s32.totalorder %s25, 0
        %s1045 = scalar_select %p1044, %s25, 0
        %s1046 = sadd.s32 %s1045, %s1043
        %s1047 = smul.addr %s1046, 4
        %s1048 = scalar_lea.vmem %s2, %s1047
        // Predicated region
        $region41: #{tpu_custom_call.1} parent=27 // pred_check
          %p1049 = pneg %p126
        $region42: #{tpu_custom_call.1} parent=27 // pred_check_branch
          %1051 = sbr.rel (%p1049) target = $region44
        $region43: #{tpu_custom_call.1} parent=27 // pred_region
          _
        $region44: #{tpu_custom_call.1} parent=27 // pred_fallthru
          _
      $region28: #{tpu_custom_call.1} parent=5 // pred_fallthru
        _
      %p1052 = scmp.le.s32.totalorder 2, %s14
      // Predicated region
      $region45: #{tpu_custom_call.1} parent=5 // pred_check
        %p1053 = pneg %p1052
      $region46: #{tpu_custom_call.1} parent=5 // pred_check_branch
        %1055 = sbr.rel (%p1053) target = $region48
      $region47: #{tpu_custom_call.1} parent=5 // pred_region
        %s1056 = ssub.s32 %s14, 2
        // Predicated region
        $region49: #{tpu_custom_call.1} parent=47 // pred_check
          %p1057 = pneg %p132
        $region50: #{tpu_custom_call.1} parent=47 // pred_check_branch
          %1059 = sbr.rel (%p1057) target = $region52
        $region51: #{tpu_custom_call.1} parent=47 // pred_region
          %p1060 = scmp.lt.s32.totalorder %s27, 1
          %s1061 = scalar_select %p1060, %s27, 1
          %p1062 = scmp.lt.s32.totalorder %s28, 0
          %s1063 = scalar_select %p1062, %s28, 0
          %s1064 = sadd.s32 %s1063, %s1061
          %s1065 = smul.addr %s1064, 4
          %s1066 = scalar_lea.vmem %s2, %s1065
        $region52: #{tpu_custom_call.1} parent=47 // pred_fallthru
          _
      $region48: #{tpu_custom_call.1} parent=5 // pred_fallthru
        _
    $region6: #{tpu_custom_call.1} parent=1 // loop_footer
      %s18 = sadd.s32 1, %s14
    $region7: #{tpu_custom_call.1} parent=1 // loop_footer_branch
      %13 = sbr.rel target = $region3
    $region8: #{tpu_custom_call.1} parent=1 // loop_exit
      _
    %1067 = vsyncpa [#allocation3], 1
    %s1068 = scalar_lea.sflag [#allocation3], 1
    %1069 = vsyncpa %s1068, 1
    %1070 = vsyncpa [#allocation5], 1
    %s1071 = scalar_lea.sflag [#allocation5], 1
    %1072 = vsyncpa %s1071, 1

</llo_original>
